<compile_context>
chip_gen: v6e
topology: v6e:2x2x1
jax: 0.10.0
libtpu: 0.0.40
codegen_flags: <defaults>
</compile_context>

<pallas_src>
import functools

import jax
import jax.numpy as jnp
from jax.experimental import pallas as pl
from jax.experimental.pallas import tpu as pltpu


def ce_loss_kernel(student_ref, teacher_ref, out_ref, *, inv_t, n_valid, tn,
                   exp_in_bf16):
    """One (tn, C) tile of rows -> (tn, 1) masked per-row loss partials."""
    i = pl.program_id(0)

    s = student_ref[...].astype(jnp.float32) * inv_t
    t = teacher_ref[...].astype(jnp.float32) * inv_t

    # Shift by per-row max for numerical stability.
    s_shift = s - jnp.max(s, axis=-1, keepdims=True)
    t_shift = t - jnp.max(t, axis=-1, keepdims=True)

    if exp_in_bf16:
        # v6e/v7x: bf16 EUP ~2x transcendental throughput; reduce in f32.
        s_exp = jnp.exp(s_shift.astype(jnp.bfloat16)).astype(jnp.float32)
        t_exp = jnp.exp(t_shift.astype(jnp.bfloat16)).astype(jnp.float32)
    else:
        s_exp = jnp.exp(s_shift)
        t_exp = jnp.exp(t_shift)

    # Student log-sum-exp (log_softmax = s_shift - lse).
    lse = jnp.log(jnp.sum(s_exp, axis=-1, keepdims=True))

    # Teacher softmax denominator; normalize once per row after the reduce.
    denom = jnp.sum(t_exp, axis=-1, keepdims=True)
    inv_d = pl.reciprocal(denom, approx=True)      # EUP vrcp (free slot)
    inv_d = inv_d * (2.0 - denom * inv_d)          # one NR step -> ~f32 exact

    # sum_c q_c * log_p_c = (sum_c t_exp_c * s_shift_c) / denom - lse  (q sums to 1)
    row = jnp.sum(t_exp * s_shift, axis=-1, keepdims=True) * inv_d - lse  # (tn, 1)

    # SELECT-mask rows past the true batch (partial last block reads garbage).
    row_idx = i * tn + jax.lax.broadcasted_iota(jnp.int32, (tn, 1), 0)
    out_ref[...] = jnp.where(row_idx < n_valid, row, 0.0)


def _round_up(x, m):
    return ((x + m - 1) // m) * m


def _vmem_limit_bytes():
    """Per-generation scoped-VMEM budget (half of physical, capped at 64 MiB)."""
    cap = 64 * 1024 * 1024
    try:
        cap = int(getattr(pltpu.get_tpu_info(), "vmem_capacity_bytes", cap))
    except Exception:
        pass
    # v5e/v6e (128 MiB phys) -> 64 MiB; v7x (64 MiB phys) -> 32 MiB.
    return int(min(cap // 2, 64 * 1024 * 1024))


def _pick_tile_rows(n, c, itemsize, vmem_limit):
    """Largest row tile that fits VMEM, clamped so the grid keeps >=2 tiles."""
    # 2 inputs x 2 pipeline buffers (input dtype) + ~6 live f32 (tn, C) temps.
    bytes_per_row = 2 * 2 * c * itemsize + 6 * c * 4
    budget = int(vmem_limit * 0.75)                # headroom for vregs/epilogue
    tn = budget // max(bytes_per_row, 1)
    tn = max(16, (tn // 16) * 16)                  # multiple of 16: clean bf16 packing
    tn = min(tn, 512)                              # roofline flat past ~512 rows
    # Keep >=2 tiles (>=4 when tiles stay >=128 rows): lets the "parallel" grid
    # axis shard across v7x's 2 TensorCores and gives the pipeline overlap.
    quarter = _round_up(pl.cdiv(n, 4), 16)
    half = _round_up(pl.cdiv(n, 2), 16)
    tn = min(tn, quarter if quarter >= 128 else half)
    return int(tn)


def ce_loss(student, teacher, temperature=1.0, *, tn=None, exp_in_bf16=None):
    """Pallas CE_Loss.forward: student, teacher are (N, C) logits (f32 or bf16)."""
    assert student.shape == teacher.shape
    N, C = student.shape
    # TODO(synk): for vocab-scale C (>~48-64k under v7x's 32 MiB scoped budget)
    # add a class-axis grid dim with online max/LSE accumulation; a single
    # (tn, C) tile no longer fits VMEM there.

    if exp_in_bf16 is None:
        exp_in_bf16 = (student.dtype == jnp.bfloat16
                       and teacher.dtype == jnp.bfloat16)

    vmem_limit = _vmem_limit_bytes()
    itemsize = max(jnp.dtype(student.dtype).itemsize,
                   jnp.dtype(teacher.dtype).itemsize)
    if tn is None:
        tn = _pick_tile_rows(N, C, itemsize, vmem_limit)

    # Last block may be partial: Pallas pads the read and masks OOB writes,
    # so no wrapper-side jnp.pad (which would cost an extra HBM pass).
    num_tiles = pl.cdiv(N, tn)

    kernel = functools.partial(
        ce_loss_kernel, inv_t=1.0 / float(temperature), n_valid=N, tn=tn,
        exp_in_bf16=bool(exp_in_bf16),
    )

    cost = pl.CostEstimate(
        flops=10 * N * C,
        transcendentals=2 * N * C,
        bytes_accessed=2 * N * C * itemsize + 4 * N,
    )

    partials = pl.pallas_call(
        kernel,
        out_shape=jax.ShapeDtypeStruct((N, 1), jnp.float32),
        grid_spec=pltpu.PrefetchScalarGridSpec(
            num_scalar_prefetch=0,
            grid=(num_tiles,),
            in_specs=[
                pl.BlockSpec((tn, C), lambda i: (i, 0)),
                pl.BlockSpec((tn, C), lambda i: (i, 0)),
            ],
            out_specs=pl.BlockSpec((tn, 1), lambda i: (i, 0)),
        ),
        compiler_params=pltpu.CompilerParams(
            dimension_semantics=("parallel",),   # independent row tiles
            vmem_limit_bytes=vmem_limit,
        ),
        cost_estimate=cost,
    )(student, teacher)

    # NOTE: N and temperature are baked in as Python constants, so each
    # distinct (N, T) recompiles -- fine for fixed-shape training loops.
    scale = -(float(temperature) ** 2) / float(N)
    return scale * jnp.sum(partials)


def ce_loss_ref(student, teacher, temperature=1.0):
    """Pure-JAX reference mirroring the PyTorch forward."""
    log_p = jax.nn.log_softmax(student / temperature, axis=1)
    q = jax.nn.softmax(teacher / temperature, axis=1)
    n = student.shape[0]
    return -(temperature * temperature) * jnp.sum(log_p * q) / n


if __name__ == "__main__":
    key = jax.random.PRNGKey(0)
    k1, k2 = jax.random.split(key)

    # Small shapes consistent with the module: batch=16, classes=32.
    N, C = 16, 32
    student = jax.random.normal(k1, (N, C), dtype=jnp.float32)
    teacher = jax.random.normal(k2, (N, C), dtype=jnp.float32)

    T = 1.0  # module default temperature
    loss = jax.block_until_ready(ce_loss(student, teacher, temperature=T))
    ref = ce_loss_ref(student, teacher, temperature=T)
    assert jnp.allclose(loss, ref, rtol=1e-5, atol=1e-5), (loss, ref)

    # Partial-last-block path (no wrapper pad): N not a multiple of the row
    # tile, non-unit temperature.
    N2, C2 = 37, 160
    s2 = jax.random.normal(k1, (N2, C2), dtype=jnp.float32)
    t2 = jax.random.normal(k2, (N2, C2), dtype=jnp.float32)
    loss2 = jax.block_until_ready(ce_loss(s2, t2, temperature=3.0))
    ref2 = ce_loss_ref(s2, t2, temperature=3.0)
    assert jnp.allclose(loss2, ref2, rtol=1e-4, atol=1e-5), (loss2, ref2)

    # bf16 inputs exercise the bf16-exp (EUP) path; compare against an f32
    # reference on the same (bf16-quantized) logits with loose tolerance.
    s3 = s2.astype(jnp.bfloat16)
    t3 = t2.astype(jnp.bfloat16)
    loss3 = jax.block_until_ready(ce_loss(s3, t3, temperature=2.0))
    ref3 = ce_loss_ref(s3.astype(jnp.float32), t3.astype(jnp.float32),
                       temperature=2.0)
    assert jnp.allclose(loss3, ref3, rtol=3e-2, atol=1e-2), (loss3, ref3)

    print("KERNEL_OK")
</pallas_src>

<mosaic_0001>
module attributes {stable_mosaic.version = 11 : i64} {
  func.func @ce_loss_kernel(%arg0: i32, %arg1: memref<16x32xf32, #tpu.memory_space<vmem>>, %arg2: memref<16x32xf32, #tpu.memory_space<vmem>>, %arg3: memref<16x1xf32, #tpu.memory_space<vmem>>) attributes {dimension_semantics = [#tpu.dimension_semantics<parallel>], iteration_bounds = array<i64: 1>, scalar_prefetch = 0 : i64, scratch_operands = 0 : i64, tpu.core_type = #tpu.core_type<tc>, window_params = [{transform_indices = @transform_0, window_bounds = array<i64: 16, 32>}, {transform_indices = @transform_1, window_bounds = array<i64: 16, 32>}, {transform_indices = @transform_2, window_bounds = array<i64: 16, 1>}]} {
    %c0 = arith.constant 0 : index
    %c0_0 = arith.constant 0 : index
    %0 = vector.load %arg1[%c0, %c0_0] : memref<16x32xf32, #tpu.memory_space<vmem>>, vector<16x32xf32>
    %cst = arith.constant 1.000000e+00 : f32
    %1 = vector.broadcast %cst : f32 to vector<16x32xf32>
    %2 = arith.mulf %0, %1 : vector<16x32xf32>
    %c0_1 = arith.constant 0 : index
    %c0_2 = arith.constant 0 : index
    %3 = vector.load %arg2[%c0_1, %c0_2] : memref<16x32xf32, #tpu.memory_space<vmem>>, vector<16x32xf32>
    %cst_3 = arith.constant 1.000000e+00 : f32
    %4 = vector.broadcast %cst_3 : f32 to vector<16x32xf32>
    %5 = arith.mulf %3, %4 : vector<16x32xf32>
    %cst_4 = arith.constant dense<0xFF800000> : vector<16xf32>
    %6 = vector.multi_reduction <maximumf>, %2, %cst_4 [1] : vector<16x32xf32> to vector<16xf32>
    %7 = vector.shape_cast %6 : vector<16xf32> to vector<16x1xf32>
    %8 = vector.broadcast %7 : vector<16x1xf32> to vector<16x32xf32>
    %9 = arith.subf %2, %8 : vector<16x32xf32>
    %cst_5 = arith.constant dense<0xFF800000> : vector<16xf32>
    %10 = vector.multi_reduction <maximumf>, %5, %cst_5 [1] : vector<16x32xf32> to vector<16xf32>
    %11 = vector.shape_cast %10 : vector<16xf32> to vector<16x1xf32>
    %12 = vector.broadcast %11 : vector<16x1xf32> to vector<16x32xf32>
    %13 = arith.subf %5, %12 : vector<16x32xf32>
    %14 = math.exp %9 : vector<16x32xf32>
    %15 = math.exp %13 : vector<16x32xf32>
    %cst_6 = arith.constant dense<0.000000e+00> : vector<16xf32>
    %16 = vector.multi_reduction <add>, %14, %cst_6 [1] : vector<16x32xf32> to vector<16xf32>
    %17 = vector.shape_cast %16 : vector<16xf32> to vector<16x1xf32>
    %18 = math.log %17 : vector<16x1xf32>
    %cst_7 = arith.constant dense<0.000000e+00> : vector<16xf32>
    %19 = vector.multi_reduction <add>, %15, %cst_7 [1] : vector<16x32xf32> to vector<16xf32>
    %20 = vector.shape_cast %19 : vector<16xf32> to vector<16x1xf32>
    %21 = tpu.reciprocal %20 {approx = true} : vector<16x1xf32> -> vector<16x1xf32>
    %22 = arith.mulf %20, %21 : vector<16x1xf32>
    %cst_8 = arith.constant 2.000000e+00 : f32
    %23 = vector.broadcast %cst_8 : f32 to vector<16x1xf32>
    %24 = arith.subf %23, %22 : vector<16x1xf32>
    %25 = arith.mulf %21, %24 : vector<16x1xf32>
    %26 = arith.mulf %15, %9 : vector<16x32xf32>
    %cst_9 = arith.constant dense<0.000000e+00> : vector<16xf32>
    %27 = vector.multi_reduction <add>, %26, %cst_9 [1] : vector<16x32xf32> to vector<16xf32>
    %28 = vector.shape_cast %27 : vector<16xf32> to vector<16x1xf32>
    %29 = arith.mulf %28, %25 : vector<16x1xf32>
    %30 = arith.subf %29, %18 : vector<16x1xf32>
    %c16_i32 = arith.constant 16 : i32
    %31 = arith.muli %arg0, %c16_i32 : i32
    %32 = tpu.iota {dimensions = array<i32: 0>} : vector<16x1xi32>
    %33 = vector.broadcast %31 : i32 to vector<16x1xi32>
    %34 = arith.addi %33, %32 : vector<16x1xi32>
    %c16_i32_10 = arith.constant 16 : i32
    %35 = vector.broadcast %c16_i32_10 : i32 to vector<16x1xi32>
    %36 = arith.cmpi slt, %34, %35 : vector<16x1xi32>
    %cst_11 = arith.constant 0.000000e+00 : f32
    %37 = vector.broadcast %cst_11 : f32 to vector<16x1xf32>
    %38 = arith.select %36, %30, %37 : vector<16x1xi1>, vector<16x1xf32>
    %c0_12 = arith.constant 0 : index
    %c0_13 = arith.constant 0 : index
    %39 = vector.load %arg3[%c0_12, %c0_13] : memref<16x1xf32, #tpu.memory_space<vmem>>, vector<16x1xf32>
    tpu.vector_store %arg3[%c0_12, %c0_13], %38 {strides = array<i32>} : memref<16x1xf32, #tpu.memory_space<vmem>>, vector<16x1xf32>,
    return
  }
  func.func @transform_0(%arg0: i32) -> (i32, i32) {
    %c0_i32 = arith.constant 0 : i32
    %c0_i32_0 = arith.constant 0 : i32
    return %arg0, %c0_i32 : i32, i32
  }
  func.func @transform_1(%arg0: i32) -> (i32, i32) {
    %c0_i32 = arith.constant 0 : i32
    %c0_i32_0 = arith.constant 0 : i32
    return %arg0, %c0_i32 : i32, i32
  }
  func.func @transform_2(%arg0: i32) -> (i32, i32) {
    %c0_i32 = arith.constant 0 : i32
    %c0_i32_0 = arith.constant 0 : i32
    return %arg0, %c0_i32 : i32, i32
  }
}

</mosaic_0001>

<llo_original>
// kernel: tpu_custom_call.1
$region0: #{tpu_custom_call.1}
  #allocation0 [shape = 'u32[]', space=smem, size = 0x4, offset = 0x4, fixed_abs, tag = 'smem constant byte address 0x4 - core index']
  #allocation1 [shape = 'u32[144,128]{1,0:T(1,128)}', space=vmem, size = 0x12000, scoped, tag = 'internal scratch']
  %s0 = inlined_call_operand.hbm [shape: f32[16,32], index: 0, kind: input, shape index: {}]
  %s1 = inlined_call_operand.hbm [shape: f32[16,32], index: 1, kind: input, shape index: {}]
  %s2 = inlined_call_operand.vmem [shape: f32[16,1], index: 2, kind: output, shape index: {}]
  %s3 = sld [smem:[#allocation0]]
  $region26: #{tpu_custom_call.1} parent=0
    _
  %s5 = ssub.s32 1, %s3
  %s6 = scalar_select 0, %s5, %s3
  $region1: #{tpu_custom_call.1} parent=0
    #allocation2 [shape = 'u8[8192]{0}', space=vmem, size = 0x2000, scoped, tag = 'input window, operand 0, single buffered']
    #allocation3 [shape = 's32[1]{0}', space=sflag, size = 0x4, scoped, tag = 'scoped memory for tpu_custom_call.1']
    #allocation4 [shape = 'u8[8192]{0}', space=vmem, size = 0x2000, scoped, tag = 'input window, operand 1, single buffered']
    #allocation5 [shape = 's32[1]{0}', space=sflag, size = 0x4, scoped, tag = 'scoped memory for tpu_custom_call.1']
    %7 = vsyncpa [#allocation3], 0
    %8 = vsyncpa [#allocation5], 0
    // Predicated region
    $region2: #{tpu_custom_call.1} parent=1 // pred_check
      _
    $region3: #{tpu_custom_call.1} parent=1 // pred_check_branch
      %10 = sbr.rel (0) target = $region5
    $region4: #{tpu_custom_call.1} parent=1 // pred_region
      %s12 = ssub.s32 256, 256
      %13 = vsyncadd [#allocation3], %s12
      %s14 = sshll.u32 [#allocation2], 4
      %s15 = int_to_ptr.vmem [resolvable:$true] %s14
      %20 = dma.hbm_to_vmem [thread:$0]  %s0, 256, %s15, [#allocation3], 128, 128, 8
    $region5: #{tpu_custom_call.1} parent=1 // pred_fallthru
      _
    // Predicated region
    $region6: #{tpu_custom_call.1} parent=1 // pred_check
      _
    $region7: #{tpu_custom_call.1} parent=1 // pred_check_branch
      %22 = sbr.rel (0) target = $region9
    $region8: #{tpu_custom_call.1} parent=1 // pred_region
      %s24 = ssub.s32 256, 256
      %25 = vsyncadd [#allocation5], %s24
      %s26 = sshll.u32 [#allocation4], 4
      %s27 = int_to_ptr.vmem [resolvable:$true] %s26
      %32 = dma.hbm_to_vmem [thread:$0]  %s1, 256, %s27, [#allocation5], 128, 128, 8
    $region9: #{tpu_custom_call.1} parent=1 // pred_fallthru
      _
    // Predicated region
    $region10: #{tpu_custom_call.1} parent=1 // pred_check
      _
    $region11: #{tpu_custom_call.1} parent=1 // pred_check_branch
      %34 = sbr.rel (0) target = $region13
    $region12: #{tpu_custom_call.1} parent=1 // pred_region
      %35 = dma.done [#allocation3], 256
    $region13: #{tpu_custom_call.1} parent=1 // pred_fallthru
      _
    // Predicated region
    $region14: #{tpu_custom_call.1} parent=1 // pred_check
      _
    $region15: #{tpu_custom_call.1} parent=1 // pred_check_branch
      %37 = sbr.rel (0) target = $region17
    $region16: #{tpu_custom_call.1} parent=1 // pred_region
      %38 = dma.done [#allocation5], 256
    $region17: #{tpu_custom_call.1} parent=1 // pred_fallthru
      _
    %v39 = vld [vmem:[#allocation2] sm:$0xff]
    %v40 = vld [vmem:[#allocation2 + $0x8] sm:$0xff]
    %v41 = vld [vmem:[#allocation4] sm:$0xff]
    %v42 = vld [vmem:[#allocation4 + $0x8] sm:$0xff]
    %vm43 = vcmask 261120
    %v44 = vsel %vm43, %v39, -inf
    %45 = vmax.xlane.f32.xlu0 %v44
    %v46 = vpop.xlane.xlu0 %45
    %v47 = vsel %vm43, %v40, -inf
    %48 = vmax.xlane.f32.xlu0 %v47
    %v49 = vpop.xlane.xlu0 %48
    %v50 = vsub.f32 %v39, %v46
    %v51 = vsub.f32 %v40, %v49
    %v52 = vsel %vm43, %v41, -inf
    %53 = vmax.xlane.f32.xlu0 %v52
    %v54 = vpop.xlane.xlu0 %53
    %v55 = vsel %vm43, %v42, -inf
    %56 = vmax.xlane.f32.xlu0 %v55
    %v57 = vpop.xlane.xlu0 %56
    %v58 = vsub.f32 %v41, %v54
    %v59 = vsub.f32 %v42, %v57
    %v60 = vmul.f32 %v50, 1.442695
    %v61 = vpow.pop %v60
    %v62 = vmul.f32 %v51, 1.442695
    %v63 = vpow.pop %v62
    %v64 = vmul.f32 %v58, 1.442695
    %v65 = vpow.pop %v64
    %v66 = vmul.f32 %v59, 1.442695
    %v67 = vpow.pop %v66
    %v68 = vsel %vm43, %v61, 0.0
    %69 = vadd.xlane.f32.xlu0 %v68
    %v70 = vpop.xlane.xlu0 %69
    %v71 = vsel %vm43, %v63, 0.0
    %72 = vadd.xlane.f32.xlu0 %v71
    %v73 = vpop.xlane.xlu0 %72
    %v74 = vlog2.pop %v70
    %v75 = vmul.f32 %v74, 0.6931472
    %v76 = vlog2.pop %v73
    %v77 = vmul.f32 %v76, 0.6931472
    %v78 = vsel %vm43, %v65, 0.0
    %79 = vadd.xlane.f32.xlu0 %v78
    %v80 = vpop.xlane.xlu0 %79
    %v81 = vsel %vm43, %v67, 0.0
    %82 = vadd.xlane.f32.xlu0 %v81
    %v83 = vpop.xlane.xlu0 %82
    %v84 = vrcp.pop %v80
    %v85 = vrcp.pop %v83
    %v86 = vmul.f32 %v80, %v84
    %v87 = vmul.f32 %v83, %v85
    %v88 = vsub.f32 2.0, %v86
    %v89 = vsub.f32 2.0, %v87
    %v90 = vmul.f32 %v84, %v88
    %v91 = vmul.f32 %v85, %v89
    %v92 = vmul.f32 %v65, %v50
    %v93 = vmul.f32 %v67, %v51
    %v94 = vsel %vm43, %v92, 0.0
    %95 = vadd.xlane.f32.xlu0 %v94
    %v96 = vpop.xlane.xlu0 %95
    %v97 = vsel %vm43, %v93, 0.0
    %98 = vadd.xlane.f32.xlu0 %v97
    %v99 = vpop.xlane.xlu0 %98
    %v100 = vmul.f32 %v96, %v90
    %v101 = vmul.f32 %v99, %v91
    %v102 = vsub.f32 %v100, %v75
    %v103 = vsub.f32 %v101, %v77
    %s104 = smul.u32 0, 16
    %v105 = vlaneseq
    %v106 = vshrl.u32 %v105, 7
    %v107 = vadd.s32 %v106, 8
    %v108 = vstv %s104
    %v109 = vadd.s32 %v108, %v106
    %v110 = vadd.s32 %v108, %v107
    %vm111 = vcmp.lt.s32.totalorder %v109, 16
    %vm112 = vcmp.lt.s32.totalorder %v110, 16
    %v113 = vsel %vm111, %v102, 0.0
    %v114 = vsel %vm112, %v103, 0.0
    %vm115 = vcmask 7168
    %116 = vst.msk [vmem:[%s2] sm:$0xff] %vm115, %v113
    %117 = vst.msk [vmem:[%s2 + $0x8] sm:$0xff] %vm115, %v114
    // Predicated region
    $region18: #{tpu_custom_call.1} parent=1 // pred_check
      _
    $region19: #{tpu_custom_call.1} parent=1 // pred_check_branch
      %119 = sbr.rel (0) target = $region21
    $region20: #{tpu_custom_call.1} parent=1 // pred_region
      _
    $region21: #{tpu_custom_call.1} parent=1 // pred_fallthru
      _
    // Predicated region
    $region22: #{tpu_custom_call.1} parent=1 // pred_check
      _
    $region23: #{tpu_custom_call.1} parent=1 // pred_check_branch
      %121 = sbr.rel (0) target = $region25
    $region24: #{tpu_custom_call.1} parent=1 // pred_region
      _
    $region25: #{tpu_custom_call.1} parent=1 // pred_fallthru
      _
    %122 = vsyncpa [#allocation3], 1
    %123 = vsyncpa [#allocation5], 1

</llo_original>
